<compile_context>
chip_gen: v7x
topology: tpu7x:2x2x1
jax: 0.10.0
libtpu: 0.0.40
codegen_flags: <defaults>
</compile_context>

<pallas_src>
import jax
import jax.numpy as jnp
from jax import lax
from jax.experimental import pallas as pl
from jax.experimental.pallas import tpu as pltpu

_LANES = 128
_SUBLANES = 8
_CHUNK = _SUBLANES * _LANES            # 1024 elements: pad granule (one vreg of f32)
_TILE_BYTES = 2 * 1024 * 1024          # ~2 MiB per input block in the tiled path


def _row_tile_for(dtype):
    """Rows per grid step so one input block is ~_TILE_BYTES (multiple of 8)."""
    itemsize = jnp.dtype(dtype).itemsize
    rows = _TILE_BYTES // (_LANES * itemsize)
    return max(_SUBLANES, (rows // _SUBLANES) * _SUBLANES)


# ---------------------------------------------------------------------------
# Kernels
# ---------------------------------------------------------------------------
def _eq_all_kernel(a_ref, b_ref, flag_ref):
    """flag[0] = all(a == b) for a single full block (small tensors)."""
    flag_ref[0] = jnp.all(a_ref[...] == b_ref[...]).astype(jnp.int32)


def _make_eq_tile_kernel(rows, row_tile):
    """Per-tile kernel: write an (8, 128) int32 partial-equality block.

    Pure VPU work (compare + element-wise min across vregs); no cross-step
    state, so the row grid axis can be 'parallel' (v7x megacore split).
    """
    ragged = (rows % row_tile) != 0

    def kernel(a_ref, b_ref, out_ref):
        eq = a_ref[...] == b_ref[...]
        if ragged:
            # Boundary block: rows past the logical extent contain garbage;
            # force them to "equal" so they never affect the flag.
            i = pl.program_id(0)
            row_ids = i * row_tile + lax.broadcasted_iota(jnp.int32, eq.shape, 0)
            eq = jnp.logical_or(eq, row_ids >= rows)
        eq_i32 = eq.astype(jnp.int32).reshape(
            row_tile // _SUBLANES, _SUBLANES, _LANES)
        out_ref[...] = jnp.min(eq_i32, axis=0)   # AND-reduce over vregs (VPU only)

    return kernel


# ---------------------------------------------------------------------------
# pallas_call builders
# ---------------------------------------------------------------------------
def _eq_flag_single(a2, b2):
    """Whole-array compare (rows <= row_tile): scalar int32 flag via SMEM."""
    rows, lanes = a2.shape
    flag = pl.pallas_call(
        _eq_all_kernel,
        out_shape=jax.ShapeDtypeStruct((1,), jnp.int32),
        grid_spec=pltpu.PrefetchScalarGridSpec(
            num_scalar_prefetch=0,
            grid=(1,),
            in_specs=[pl.BlockSpec((rows, lanes), lambda i: (0, 0)),
                      pl.BlockSpec((rows, lanes), lambda i: (0, 0))],
            out_specs=pl.BlockSpec(memory_space=pltpu.MemorySpace.SMEM),
        ),
        compiler_params=pltpu.CompilerParams(
            dimension_semantics=("arbitrary",)),
    )(a2, b2)
    return flag[0]


def _eq_flag_tiled(a2, b2, row_tile):
    """Row-tiled compare: per-tile (8,128) partial flags, 'parallel' grid."""
    rows, lanes = a2.shape
    num_tiles = pl.cdiv(rows, row_tile)
    partial = pl.pallas_call(
        _make_eq_tile_kernel(rows, row_tile),
        out_shape=jax.ShapeDtypeStruct((num_tiles * _SUBLANES, _LANES), jnp.int32),
        grid_spec=pltpu.PrefetchScalarGridSpec(
            num_scalar_prefetch=0,
            grid=(num_tiles,),
            in_specs=[pl.BlockSpec((row_tile, lanes), lambda i: (i, 0)),
                      pl.BlockSpec((row_tile, lanes), lambda i: (i, 0))],
            out_specs=pl.BlockSpec((_SUBLANES, _LANES), lambda i: (i, 0)),
        ),
        compiler_params=pltpu.CompilerParams(
            dimension_semantics=("parallel",)),
    )(a2, b2)
    # Tiny final AND across per-tile partials; fused into the jitted program.
    return jnp.min(partial)


def _tensor_equal_flag(a, b):
    """all(a == b) as a 0/1 int32 scalar on device.  a.shape == b.shape."""
    if a.size == 0:
        return jnp.int32(1)                      # empty tensors trivially match
    if a.dtype != b.dtype:
        ct = jnp.result_type(a.dtype, b.dtype)   # only if dtypes actually differ
        a = a.astype(ct)
        b = b.astype(ct)
    a = a.reshape(-1)
    b = b.reshape(-1)
    n = a.shape[0]
    padded = pl.cdiv(n, _CHUNK) * _CHUNK
    if padded != n:
        # Only copying path: ragged sizes get zero-padded identically on both
        # sides, so padding never changes the equality result.
        a = jnp.pad(a, (0, padded - n))
        b = jnp.pad(b, (0, padded - n))
    rows = padded // _LANES
    a2 = a.reshape(rows, _LANES)                 # free: contiguous bitcast
    b2 = b.reshape(rows, _LANES)
    row_tile = _row_tile_for(a2.dtype)
    if rows <= row_tile:
        return _eq_flag_single(a2, b2)
    return _eq_flag_tiled(a2, b2, row_tile)


@jax.jit
def _check_inputs(x, y, ex_x, ex_y):
    """1 iff (x == ex_x).all() and (y == ex_y).all(); one fused dispatch."""
    return _tensor_equal_flag(x, ex_x) & _tensor_equal_flag(y, ex_y)


class NonKeyWordArgumentsModelPallas:
    """JAX/Pallas equivalent of NonKeyWordArgumentsModel."""

    # TODO(synk): `no_nncf_trace()` is an NNCF tracing context manager with no
    # JAX/Pallas equivalent; only the equality asserts it wraps are modeled.

    def __init__(self, example_input):
        self._example_input = tuple(jnp.asarray(t) for t in example_input)

    def __call__(self, x, y):
        x = jnp.asarray(x)
        y = jnp.asarray(y)
        ex_x, ex_y = self._example_input
        assert x.shape == ex_x.shape and y.shape == ex_y.shape, (
            "input shapes do not match example_input")

        flag = _check_inputs(x, y, ex_x, ex_y)

        # Mirrors PyTorch's `assert x == example_input[...]`: one blocking
        # device->host scalar readback per call.
        # TODO(synk): jax.experimental.checkify would keep this on-device if
        # async assert semantics were acceptable.
        assert bool(flag), "inputs do not match example_input"

        # Identity pass-through: outputs are the inputs, no device copy.
        return (x, y)


if __name__ == "__main__":
    key = jax.random.PRNGKey(0)
    kx, ky = jax.random.split(key)

    # Small NCHW-style inputs (single-block kernel path, native dtypes).
    x = jax.random.normal(kx, (2, 4, 16, 16), dtype=jnp.float32)
    y = jax.random.randint(ky, (2, 4, 16, 16), minval=-10, maxval=10,
                           dtype=jnp.int32)

    model = NonKeyWordArgumentsModelPallas(example_input=(x, y))
    out_x, out_y = model(x, y)
    jax.block_until_ready((out_x, out_y))
    assert jnp.array_equal(out_x, x) and jnp.array_equal(out_y, y)

    # A mismatching input must trip the assert (flag == 0).
    x_bad = x.at[0, 0, 0, 0].add(1.0)
    tripped = False
    try:
        model(x_bad, y)
    except AssertionError:
        tripped = True
    assert tripped, "mismatching input did not trip the assert"

    # Larger input exercises the tiled, 'parallel'-axis path (ragged last tile).
    xb = jax.random.normal(jax.random.PRNGKey(1), (10, 528, 128), jnp.float32)
    yb = jax.random.normal(jax.random.PRNGKey(2), (10, 528, 128), jnp.float32)
    model_big = NonKeyWordArgumentsModelPallas(example_input=(xb, yb))
    jax.block_until_ready(model_big(xb, yb))

    # Ragged (non-multiple-of-128) sizes exercise the padded fallback path.
    xs = jax.random.normal(jax.random.PRNGKey(3), (2, 3, 5, 7), jnp.float32)
    ys = jnp.arange(2 * 3 * 5, dtype=jnp.int32).reshape(2, 3, 5)
    model_small = NonKeyWordArgumentsModelPallas(example_input=(xs, ys))
    jax.block_until_ready(model_small(xs, ys))

    print("KERNEL_OK")
</pallas_src>

<mosaic_0001>
module attributes {stable_mosaic.version = 11 : i64} {
  func.func @_eq_all_kernel(%arg0: i32, %arg1: memref<16x128xf32, #tpu.memory_space<vmem>>, %arg2: memref<16x128xf32, #tpu.memory_space<vmem>>, %arg3: memref<1xi32, #tpu.memory_space<smem>>) attributes {dimension_semantics = [#tpu.dimension_semantics<arbitrary>], iteration_bounds = array<i64: 1>, scalar_prefetch = 0 : i64, scratch_operands = 0 : i64, tpu.core_type = #tpu.core_type<tc>, window_params = [{pipeline_mode = #tpu.pipeline_mode<synchronous>, transform_indices = @transform_0, window_bounds = array<i64: 16, 128>}, {pipeline_mode = #tpu.pipeline_mode<synchronous>, transform_indices = @transform_1, window_bounds = array<i64: 16, 128>}, {transform_indices = @transform_2, window_bounds = array<i64: 1>}]} {
    %c0 = arith.constant 0 : index
    %c0_0 = arith.constant 0 : index
    %0 = vector.load %arg1[%c0, %c0_0] : memref<16x128xf32, #tpu.memory_space<vmem>>, vector<16x128xf32>
    %c0_1 = arith.constant 0 : index
    %c0_2 = arith.constant 0 : index
    %1 = vector.load %arg2[%c0_1, %c0_2] : memref<16x128xf32, #tpu.memory_space<vmem>>, vector<16x128xf32>
    %2 = arith.cmpf oeq, %0, %1 : vector<16x128xf32>
    %cst = arith.constant 1.000000e+00 : f32
    %cst_3 = arith.constant 0.000000e+00 : f32
    %3 = vector.broadcast %cst : f32 to vector<16x128xf32>
    %4 = vector.broadcast %cst_3 : f32 to vector<16x128xf32>
    %5 = arith.select %2, %3, %4 : vector<16x128xi1>, vector<16x128xf32>
    %6 = vector.shape_cast %5 : vector<16x128xf32> to vector<1x16x128xf32>
    %cst_4 = arith.constant dense<0x7F800000> : vector<1xf32>
    %7 = vector.multi_reduction <minimumf>, %6, %cst_4 [1, 2] : vector<1x16x128xf32> to vector<1xf32>
    %8 = vector.shape_cast %7 : vector<1xf32> to vector<1x1x1xf32>
    %9 = vector.extract %8[0, 0, 0] : f32 from vector<1x1x1xf32>
    %cst_5 = arith.constant 0.000000e+00 : f32
    %10 = arith.cmpf ogt, %9, %cst_5 : f32
    %11 = arith.extui %10 : i1 to i32
    %c0_6 = arith.constant 0 : index
    %12 = memref.load %arg3[%c0_6] : memref<1xi32, #tpu.memory_space<smem>>
    memref.store %11, %arg3[%c0_6] : memref<1xi32, #tpu.memory_space<smem>>
    return
  }
  func.func @transform_0(%arg0: i32) -> (i32, i32) {
    %c0_i32 = arith.constant 0 : i32
    %c0_i32_0 = arith.constant 0 : i32
    %c0_i32_1 = arith.constant 0 : i32
    return %c0_i32, %c0_i32_0 : i32, i32
  }
  func.func @transform_1(%arg0: i32) -> (i32, i32) {
    %c0_i32 = arith.constant 0 : i32
    %c0_i32_0 = arith.constant 0 : i32
    %c0_i32_1 = arith.constant 0 : i32
    return %c0_i32, %c0_i32_0 : i32, i32
  }
  func.func @transform_2(%arg0: i32) -> i32 {
    %c0_i32 = arith.constant 0 : i32
    %c0_i32_0 = arith.constant 0 : i32
    return %c0_i32 : i32
  }
}

module attributes {stable_mosaic.version = 11 : i64} {
  func.func @_eq_all_kernel(%arg0: i32, %arg1: memref<16x128xi32, #tpu.memory_space<vmem>>, %arg2: memref<16x128xi32, #tpu.memory_space<vmem>>, %arg3: memref<1xi32, #tpu.memory_space<smem>>) attributes {dimension_semantics = [#tpu.dimension_semantics<arbitrary>], iteration_bounds = array<i64: 1>, scalar_prefetch = 0 : i64, scratch_operands = 0 : i64, tpu.core_type = #tpu.core_type<tc>, window_params = [{pipeline_mode = #tpu.pipeline_mode<synchronous>, transform_indices = @transform_0, window_bounds = array<i64: 16, 128>}, {pipeline_mode = #tpu.pipeline_mode<synchronous>, transform_indices = @transform_1, window_bounds = array<i64: 16, 128>}, {transform_indices = @transform_2, window_bounds = array<i64: 1>}]} {
    %c0 = arith.constant 0 : index
    %c0_0 = arith.constant 0 : index
    %0 = vector.load %arg1[%c0, %c0_0] : memref<16x128xi32, #tpu.memory_space<vmem>>, vector<16x128xi32>
    %c0_1 = arith.constant 0 : index
    %c0_2 = arith.constant 0 : index
    %1 = vector.load %arg2[%c0_1, %c0_2] : memref<16x128xi32, #tpu.memory_space<vmem>>, vector<16x128xi32>
    %2 = arith.cmpi eq, %0, %1 : vector<16x128xi32>
    %cst = arith.constant 1.000000e+00 : f32
    %cst_3 = arith.constant 0.000000e+00 : f32
    %3 = vector.broadcast %cst : f32 to vector<16x128xf32>
    %4 = vector.broadcast %cst_3 : f32 to vector<16x128xf32>
    %5 = arith.select %2, %3, %4 : vector<16x128xi1>, vector<16x128xf32>
    %6 = vector.shape_cast %5 : vector<16x128xf32> to vector<1x16x128xf32>
    %cst_4 = arith.constant dense<0x7F800000> : vector<1xf32>
    %7 = vector.multi_reduction <minimumf>, %6, %cst_4 [1, 2] : vector<1x16x128xf32> to vector<1xf32>
    %8 = vector.shape_cast %7 : vector<1xf32> to vector<1x1x1xf32>
    %9 = vector.extract %8[0, 0, 0] : f32 from vector<1x1x1xf32>
    %cst_5 = arith.constant 0.000000e+00 : f32
    %10 = arith.cmpf ogt, %9, %cst_5 : f32
    %11 = arith.extui %10 : i1 to i32
    %c0_6 = arith.constant 0 : index
    %12 = memref.load %arg3[%c0_6] : memref<1xi32, #tpu.memory_space<smem>>
    memref.store %11, %arg3[%c0_6] : memref<1xi32, #tpu.memory_space<smem>>
    return
  }
  func.func @transform_0(%arg0: i32) -> (i32, i32) {
    %c0_i32 = arith.constant 0 : i32
    %c0_i32_0 = arith.constant 0 : i32
    %c0_i32_1 = arith.constant 0 : i32
    return %c0_i32, %c0_i32_0 : i32, i32
  }
  func.func @transform_1(%arg0: i32) -> (i32, i32) {
    %c0_i32 = arith.constant 0 : i32
    %c0_i32_0 = arith.constant 0 : i32
    %c0_i32_1 = arith.constant 0 : i32
    return %c0_i32, %c0_i32_0 : i32, i32
  }
  func.func @transform_2(%arg0: i32) -> i32 {
    %c0_i32 = arith.constant 0 : i32
    %c0_i32_0 = arith.constant 0 : i32
    return %c0_i32 : i32
  }
}

</mosaic_0001>

<llo_original>
// kernel: _check_inputs.2
$region0: #{_check_inputs.2}
  #allocation0 [shape = 'u32[]', space=smem, size = 0x4, offset = 0x4, fixed_abs, tag = 'smem constant byte address 0x4 - core index']
  #allocation1 [shape = 'u32[144,128]{1,0:T(1,128)}', space=vmem, size = 0x12000, scoped, tag = 'internal scratch']
  %s0 = inlined_call_operand.vmem [shape: f32[16,128], index: 0, kind: input, shape index: {}]
  %s1 = inlined_call_operand.vmem [shape: f32[16,128], index: 1, kind: input, shape index: {}]
  %s2 = inlined_call_operand.hbm [shape: s32[1], index: 2, kind: output, shape index: {}]
  %s3 = sld [smem:[#allocation0]]
  $region18: #{_check_inputs.2} parent=0
    _
  %s5 = ssub.s32 1, %s3
  %s6 = scalar_select 0, %s5, %s3
  $region1: #{_check_inputs.2} parent=0
    #allocation2 [shape = 'u8[512]{0}', space=smem, size = 0x200, scoped, tag = 'output window, operand 0, single buffered']
    #allocation3 [shape = 's32[1]{0}', space=sflag, size = 0x4, scoped, tag = 'scoped memory for _check_inputs.2']
    %7 = vsyncpa [#allocation3], 0
    // Predicated region
    $region2: #{_check_inputs.2} parent=1 // pred_check
      _
    $region3: #{_check_inputs.2} parent=1 // pred_check_branch
      %9 = sbr.rel (0) target = $region5
    $region4: #{_check_inputs.2} parent=1 // pred_region
      _
    $region5: #{_check_inputs.2} parent=1 // pred_fallthru
      _
    // Predicated region
    $region6: #{_check_inputs.2} parent=1 // pred_check
      _
    $region7: #{_check_inputs.2} parent=1 // pred_check_branch
      %11 = sbr.rel (0) target = $region9
    $region8: #{_check_inputs.2} parent=1 // pred_region
      _
    $region9: #{_check_inputs.2} parent=1 // pred_fallthru
      _
    %v12 = vld [vmem:[%s0] sm:$0xff]
    %v13 = vld [vmem:[%s0 + $0x8] sm:$0xff]
    %v14 = vld [vmem:[%s1] sm:$0xff]
    %v15 = vld [vmem:[%s1 + $0x8] sm:$0xff]
    %vm16 = vcmp.eq.f32.partialorder %v12, %v14
    %vm17 = vcmp.eq.f32.partialorder %v13, %v15
    %v18 = vsel %vm16, 1.0, 0.0
    %v19 = vsel %vm17, 1.0, 0.0
    %v20 = vmin.f32 %v18, %v19
    %21 = vmin.xlane.f32.xlu0 %v20
    %v22 = vpop.xlane.xlu0 %21
    %v23 = vrot.slane %v22, 4
    %v24 = vmin.f32 %v22, %v23
    %v25 = vrot.slane %v24, 2
    %v26 = vmin.f32 %v24, %v25
    %v27 = vrot.slane %v26, 1
    %v28 = vmin.f32 %v26, %v27
    %s29 = vtos %v28
    %p30 = scmp.gt.f32.partialorder %s29, 0.0
    %s31 = scalar_select %p30, 1, 0
    %s32 = scalar_lea.smem [#allocation2], 0
    %33 = sst [smem:[%s32]] %s31
    // Predicated region
    $region10: #{_check_inputs.2} parent=1 // pred_check
      _
    $region11: #{_check_inputs.2} parent=1 // pred_check_branch
      %35 = sbr.rel (0) target = $region13
    $region12: #{_check_inputs.2} parent=1 // pred_region
      %s37 = ssub.s32 16, 16
      %38 = vsyncadd [#allocation3], %s37
      %41 = dma.smem_to_hbm [#allocation2], 16, %s2, [#allocation3]
    $region13: #{_check_inputs.2} parent=1 // pred_fallthru
      _
    // Predicated region
    $region14: #{_check_inputs.2} parent=1 // pred_check
      _
    $region15: #{_check_inputs.2} parent=1 // pred_check_branch
      %43 = sbr.rel (0) target = $region17
    $region16: #{_check_inputs.2} parent=1 // pred_region
      %44 = dma.done [#allocation3], 16
    $region17: #{_check_inputs.2} parent=1 // pred_fallthru
      _
    %45 = sfence
    %46 = vsyncpa [#allocation3], 1

// kernel: _check_inputs.3
$region0: #{_check_inputs.3}
  #allocation0 [shape = 'u32[]', space=smem, size = 0x4, offset = 0x4, fixed_abs, tag = 'smem constant byte address 0x4 - core index']
  #allocation1 [shape = 'u32[144,128]{1,0:T(1,128)}', space=vmem, size = 0x12000, scoped, tag = 'internal scratch']
  %s0 = inlined_call_operand.vmem [shape: s32[16,128], index: 0, kind: input, shape index: {}]
  %s1 = inlined_call_operand.vmem [shape: s32[16,128], index: 1, kind: input, shape index: {}]
  %s2 = inlined_call_operand.hbm [shape: s32[1], index: 2, kind: output, shape index: {}]
  %s3 = sld [smem:[#allocation0]]
  $region18: #{_check_inputs.3} parent=0
    _
  %s5 = ssub.s32 1, %s3
  %s6 = scalar_select 0, %s5, %s3
  $region1: #{_check_inputs.3} parent=0
    #allocation2 [shape = 'u8[512]{0}', space=smem, size = 0x200, scoped, tag = 'output window, operand 0, single buffered']
    #allocation3 [shape = 's32[1]{0}', space=sflag, size = 0x4, scoped, tag = 'scoped memory for _check_inputs.3']
    %7 = vsyncpa [#allocation3], 0
    // Predicated region
    $region2: #{_check_inputs.3} parent=1 // pred_check
      _
    $region3: #{_check_inputs.3} parent=1 // pred_check_branch
      %9 = sbr.rel (0) target = $region5
    $region4: #{_check_inputs.3} parent=1 // pred_region
      _
    $region5: #{_check_inputs.3} parent=1 // pred_fallthru
      _
    // Predicated region
    $region6: #{_check_inputs.3} parent=1 // pred_check
      _
    $region7: #{_check_inputs.3} parent=1 // pred_check_branch
      %11 = sbr.rel (0) target = $region9
    $region8: #{_check_inputs.3} parent=1 // pred_region
      _
    $region9: #{_check_inputs.3} parent=1 // pred_fallthru
      _
    %v12 = vld [vmem:[%s0] sm:$0xff]
    %v13 = vld [vmem:[%s0 + $0x8] sm:$0xff]
    %v14 = vld [vmem:[%s1] sm:$0xff]
    %v15 = vld [vmem:[%s1 + $0x8] sm:$0xff]
    %vm16 = vcmp.eq.s32.totalorder %v12, %v14
    %vm17 = vcmp.eq.s32.totalorder %v13, %v15
    %v18 = vsel %vm16, 1.0, 0.0
    %v19 = vsel %vm17, 1.0, 0.0
    %v20 = vmin.f32 %v18, %v19
    %21 = vmin.xlane.f32.xlu0 %v20
    %v22 = vpop.xlane.xlu0 %21
    %v23 = vrot.slane %v22, 4
    %v24 = vmin.f32 %v22, %v23
    %v25 = vrot.slane %v24, 2
    %v26 = vmin.f32 %v24, %v25
    %v27 = vrot.slane %v26, 1
    %v28 = vmin.f32 %v26, %v27
    %s29 = vtos %v28
    %p30 = scmp.gt.f32.partialorder %s29, 0.0
    %s31 = scalar_select %p30, 1, 0
    %s32 = scalar_lea.smem [#allocation2], 0
    %33 = sst [smem:[%s32]] %s31
    // Predicated region
    $region10: #{_check_inputs.3} parent=1 // pred_check
      _
    $region11: #{_check_inputs.3} parent=1 // pred_check_branch
      %35 = sbr.rel (0) target = $region13
    $region12: #{_check_inputs.3} parent=1 // pred_region
      %s37 = ssub.s32 16, 16
      %38 = vsyncadd [#allocation3], %s37
      %41 = dma.smem_to_hbm [#allocation2], 16, %s2, [#allocation3]
    $region13: #{_check_inputs.3} parent=1 // pred_fallthru
      _
    // Predicated region
    $region14: #{_check_inputs.3} parent=1 // pred_check
      _
    $region15: #{_check_inputs.3} parent=1 // pred_check_branch
      %43 = sbr.rel (0) target = $region17
    $region16: #{_check_inputs.3} parent=1 // pred_region
      %44 = dma.done [#allocation3], 16
    $region17: #{_check_inputs.3} parent=1 // pred_fallthru
      _
    %45 = sfence
    %46 = vsyncpa [#allocation3], 1

</llo_original>
